<compile_context>
chip_gen: v7x
topology: tpu7x:2x2x1
jax: 0.10.0
libtpu: 0.0.40
codegen_flags: <defaults>
</compile_context>

<pallas_src>
import functools

import numpy as np
import jax
import jax.numpy as jnp
from jax.experimental import pallas as pl
from jax.experimental.pallas import tpu as pltpu


# ----------------------------- parameter setup -----------------------------

def hann_window(win_length: int) -> np.ndarray:
    # scipy.signal.get_window('hann', win_length, fftbins=True)  (periodic Hann)
    n = np.arange(win_length)
    return (0.5 - 0.5 * np.cos(2.0 * np.pi * n / win_length)).astype(np.float32)


def make_windowed_dft_basis(n_fft: int, window: np.ndarray,
                            n_pad_cols: int) -> np.ndarray:
    """(n_fft, n_pad_cols) basis: [window*cos | -window*sin | zero-pad].

    Columns 0..n_freq-1 give the real part of rfft(window*frame), columns
    n_freq..2*n_freq-1 give the imaginary part.  The window is centered and
    zero-padded to n_fft if win_length < n_fft (torch.stft semantics).
    """
    n_freq = n_fft // 2 + 1
    win_length = window.shape[0]
    w = np.zeros(n_fft, dtype=np.float64)
    left = (n_fft - win_length) // 2
    w[left:left + win_length] = window.astype(np.float64)

    n = np.arange(n_fft)[:, None].astype(np.float64)
    f = np.arange(n_freq)[None, :].astype(np.float64)
    ang = 2.0 * np.pi * f * n / n_fft
    cos_b = w[:, None] * np.cos(ang)
    sin_b = -w[:, None] * np.sin(ang)
    basis = np.concatenate([cos_b, sin_b], axis=1).astype(np.float32)

    out = np.zeros((n_fft, n_pad_cols), dtype=np.float32)
    out[:, :2 * n_freq] = basis
    return out


def _round_up(x: int, m: int) -> int:
    return ((x + m - 1) // m) * m


# ------------------------------ Pallas kernel -------------------------------

def _stft_kernel(rows_ref, basis_ref, out_ref, *, hop, n_sub, tm):
    """Windowed DFT of one tile of tm frames for one batch element.

    rows_ref : (n_rows_pad, hop)  reflect-padded signal viewed as hop-sized rows
    basis_ref: (n_fft, N_pad)     [win*cos | -win*sin | 0-pad] basis
    out_ref  : (tm, N_pad)        f32, [real | imag | 0-pad] per frame

    Frame f of this tile is rows[base+f : base+f+n_sub, :].reshape(n_fft), so
    frames_tile @ basis == sum_r rows[base+r : base+r+tm, :] @ basis[r*hop:(r+1)*hop, :].
    This does the frame gather in-kernel (no framed tensor ever hits HBM).
    """
    i = pl.program_id(1)
    base = pl.multiple_of(i * tm, tm)
    acc = jnp.zeros(out_ref.shape, jnp.float32)
    for r in range(n_sub):
        chunk = rows_ref[pl.ds(base + r, tm), :]               # (tm, hop)
        acc = acc + jnp.dot(chunk, basis_ref[r * hop:(r + 1) * hop, :],
                            preferred_element_type=jnp.float32)
    out_ref[...] = acc


# --------------------------------- STFT op ----------------------------------

def stft_forward(x: jnp.ndarray, filter_length: int, hop_length: int,
                 win_length: int, window_np: np.ndarray,
                 tm_max: int = 256,
                 compute_dtype=jnp.float32) -> jnp.ndarray:
    """Matches torch.stft(x, n_fft, hop, win, window, pad_mode='reflect',
    return_complex=True) for 2-D input x of shape (B, T)."""
    assert x.ndim == 2
    B, T = x.shape
    n_fft = filter_length
    hop = hop_length
    n_freq = n_fft // 2 + 1
    pad = n_fft // 2
    n_frames = 1 + T // hop

    # TODO(synk): general hop (n_fft % hop != 0) would need an in-kernel gather
    # or a framed-tensor fallback; the module's defaults (800/200) satisfy this.
    assert n_fft % hop == 0, "stft_forward requires hop_length to divide filter_length"
    R = n_fft // hop

    # Output column layout: [real(n_freq) | imag(n_freq)] padded to lane width.
    N = 2 * n_freq
    N_pad = _round_up(N, 128)
    # TODO(synk): for very large n_fft (>=2k) on v7x, add an N grid axis to keep
    # the double-buffered basis tile inside the 64 MiB VMEM; not needed at the
    # module's default n_fft=800 (~5.7 MiB).
    basis = jnp.asarray(make_windowed_dft_basis(n_fft, window_np, N_pad),
                        dtype=compute_dtype)

    # Frame-tile size: large to amortize per-grid-step overhead, but no bigger
    # than the (8-rounded) number of frames.
    tm = min(tm_max, _round_up(n_frames, 8))
    n_tiles = pl.cdiv(n_frames, tm)
    n_frames_pad = n_tiles * tm
    n_rows_pad = n_frames_pad + R - 1          # rows needed by the last frame tile
    target_len = n_rows_pad * hop

    # center=True reflect padding (XLA glue, ~1x signal copy).
    xp = jnp.pad(x, ((0, 0), (pad, pad)), mode="reflect")
    Tp = T + 2 * pad
    if target_len >= Tp:
        xp = jnp.pad(xp, ((0, 0), (0, target_len - Tp)))
    else:
        xp = xp[:, :target_len]
    # "rows" view of the padded signal: same bytes as the signal, NOT a framed
    # (4x) tensor.  The kernel slides over it to build frames on-chip.
    rows = xp.reshape(B, n_rows_pad, hop).astype(compute_dtype)

    kernel = functools.partial(_stft_kernel, hop=hop, n_sub=R, tm=tm)
    out = pl.pallas_call(
        kernel,
        out_shape=jax.ShapeDtypeStruct((B, n_frames_pad, N_pad), jnp.float32),
        grid_spec=pltpu.PrefetchScalarGridSpec(
            num_scalar_prefetch=0,
            grid=(B, n_tiles),
            in_specs=[
                # Whole (small) padded signal for this batch stays resident;
                # constant block index over the frame-tile axis so it is not
                # re-DMA'd every step.
                pl.BlockSpec((None, n_rows_pad, hop), lambda b, i: (b, 0, 0)),
                pl.BlockSpec((n_fft, N_pad), lambda b, i: (0, 0)),
            ],
            out_specs=pl.BlockSpec((None, tm, N_pad), lambda b, i: (b, i, 0)),
        ),
        compiler_params=pltpu.CompilerParams(
            dimension_semantics=("parallel", "parallel")),
    )(rows, basis)

    real = out[:, :n_frames, :n_freq]
    imag = out[:, :n_frames, n_freq:2 * n_freq]
    # TODO(synk): complex dtype is unsupported inside Pallas TPU kernels; the
    # real/imag -> complex64 assembly and the (frames, freq) -> (freq, frames)
    # transpose stay in plain JAX.
    spec = (real + 1j * imag).astype(jnp.complex64)
    return jnp.transpose(spec, (0, 2, 1))                      # (B, n_freq, n_frames)


# ----------------------------------- main ------------------------------------

if __name__ == "__main__":
    # Small shapes consistent with the module (scaled-down filter/hop/win).
    filter_length = 64
    hop_length = 16
    win_length = 64
    B, T = 2, 256

    window = hann_window(win_length)

    key = jax.random.PRNGKey(0)
    x = jax.random.normal(key, (B, T), dtype=jnp.float32)

    spec = stft_forward(x, filter_length, hop_length, win_length, window)
    spec = jax.block_until_ready(spec)

    # numpy reference (same semantics as torch.stft)
    xn = np.asarray(x)
    pad = filter_length // 2
    xpn = np.pad(xn, ((0, 0), (pad, pad)), mode="reflect")
    n_frames = 1 + T // hop_length
    idx = (np.arange(n_frames)[:, None] * hop_length
           + np.arange(filter_length)[None, :])
    frames_ref = xpn[:, idx] * window[None, None, :]           # (B, n_frames, n_fft)
    ref = np.fft.rfft(frames_ref, n=filter_length, axis=-1)    # (B, n_frames, n_freq)
    ref = np.transpose(ref, (0, 2, 1)).astype(np.complex64)    # (B, n_freq, n_frames)

    assert spec.shape == ref.shape and spec.dtype == jnp.complex64
    np.testing.assert_allclose(np.asarray(spec), ref, rtol=1e-4, atol=1e-3)
    print("KERNEL_OK")
</pallas_src>

<mosaic_0001>
module attributes {stable_mosaic.version = 11 : i64} {
  func.func @_stft_kernel(%arg0: i32, %arg1: i32, %arg2: memref<1x27x16xf32, #tpu.memory_space<vmem>>, %arg3: memref<64x128xf32, #tpu.memory_space<vmem>>, %arg4: memref<1x24x128xf32, #tpu.memory_space<vmem>>) attributes {dimension_semantics = [#tpu.dimension_semantics<parallel>, #tpu.dimension_semantics<parallel>], iteration_bounds = array<i64: 2, 1>, scalar_prefetch = 0 : i64, scratch_operands = 0 : i64, tpu.core_type = #tpu.core_type<tc>, window_params = [{transform_indices = @transform_0, window_bounds = array<i64: 1, 27, 16>}, {pipeline_mode = #tpu.pipeline_mode<synchronous>, transform_indices = @transform_1, window_bounds = array<i64: 64, 128>}, {transform_indices = @transform_2, window_bounds = array<i64: 1, 24, 128>}]} {
    %c24_i32 = arith.constant 24 : i32
    %0 = arith.muli %arg1, %c24_i32 : i32
    %1 = tpu.assume_multiple %0, 24 : i32
    %cst = arith.constant 0.000000e+00 : f32
    %2 = vector.broadcast %cst : f32 to vector<24x128xf32>
    %c0_i32 = arith.constant 0 : i32
    %3 = arith.addi %1, %c0_i32 : i32
    %c0 = arith.constant 0 : index
    %4 = arith.index_cast %3 : i32 to index
    %c0_0 = arith.constant 0 : index
    %5 = vector.load %arg2[%c0, %4, %c0_0] : memref<1x27x16xf32, #tpu.memory_space<vmem>>, vector<1x24x16xf32>
    %6 = vector.shape_cast %5 : vector<1x24x16xf32> to vector<24x16xf32>
    %c0_1 = arith.constant 0 : index
    %c0_2 = arith.constant 0 : index
    %7 = vector.load %arg3[%c0_1, %c0_2] : memref<64x128xf32, #tpu.memory_space<vmem>>, vector<16x128xf32>
    %cst_3 = arith.constant dense<0.000000e+00> : vector<24x128xf32>
    %8 = tpu.matmul %6, %7, %cst_3 {dimension_numbers = #tpu.dot_dimension_numbers<[1], [0], [0], [1], [0, 0, 1, 1], [], []>} : vector<24x16xf32>, vector<16x128xf32>, vector<24x128xf32> -> vector<24x128xf32>
    %9 = arith.addf %2, %8 : vector<24x128xf32>
    %c1_i32 = arith.constant 1 : i32
    %10 = arith.addi %1, %c1_i32 : i32
    %c0_4 = arith.constant 0 : index
    %11 = arith.index_cast %10 : i32 to index
    %c0_5 = arith.constant 0 : index
    %12 = vector.load %arg2[%c0_4, %11, %c0_5] : memref<1x27x16xf32, #tpu.memory_space<vmem>>, vector<1x24x16xf32>
    %13 = vector.shape_cast %12 : vector<1x24x16xf32> to vector<24x16xf32>
    %c16 = arith.constant 16 : index
    %c0_6 = arith.constant 0 : index
    %14 = vector.load %arg3[%c16, %c0_6] : memref<64x128xf32, #tpu.memory_space<vmem>>, vector<16x128xf32>
    %cst_7 = arith.constant dense<0.000000e+00> : vector<24x128xf32>
    %15 = tpu.matmul %13, %14, %cst_7 {dimension_numbers = #tpu.dot_dimension_numbers<[1], [0], [0], [1], [0, 0, 1, 1], [], []>} : vector<24x16xf32>, vector<16x128xf32>, vector<24x128xf32> -> vector<24x128xf32>
    %16 = arith.addf %9, %15 : vector<24x128xf32>
    %c2_i32 = arith.constant 2 : i32
    %17 = arith.addi %1, %c2_i32 : i32
    %c0_8 = arith.constant 0 : index
    %18 = arith.index_cast %17 : i32 to index
    %c0_9 = arith.constant 0 : index
    %19 = vector.load %arg2[%c0_8, %18, %c0_9] : memref<1x27x16xf32, #tpu.memory_space<vmem>>, vector<1x24x16xf32>
    %20 = vector.shape_cast %19 : vector<1x24x16xf32> to vector<24x16xf32>
    %c32 = arith.constant 32 : index
    %c0_10 = arith.constant 0 : index
    %21 = vector.load %arg3[%c32, %c0_10] : memref<64x128xf32, #tpu.memory_space<vmem>>, vector<16x128xf32>
    %cst_11 = arith.constant dense<0.000000e+00> : vector<24x128xf32>
    %22 = tpu.matmul %20, %21, %cst_11 {dimension_numbers = #tpu.dot_dimension_numbers<[1], [0], [0], [1], [0, 0, 1, 1], [], []>} : vector<24x16xf32>, vector<16x128xf32>, vector<24x128xf32> -> vector<24x128xf32>
    %23 = arith.addf %16, %22 : vector<24x128xf32>
    %c3_i32 = arith.constant 3 : i32
    %24 = arith.addi %1, %c3_i32 : i32
    %c0_12 = arith.constant 0 : index
    %25 = arith.index_cast %24 : i32 to index
    %c0_13 = arith.constant 0 : index
    %26 = vector.load %arg2[%c0_12, %25, %c0_13] : memref<1x27x16xf32, #tpu.memory_space<vmem>>, vector<1x24x16xf32>
    %27 = vector.shape_cast %26 : vector<1x24x16xf32> to vector<24x16xf32>
    %c48 = arith.constant 48 : index
    %c0_14 = arith.constant 0 : index
    %28 = vector.load %arg3[%c48, %c0_14] : memref<64x128xf32, #tpu.memory_space<vmem>>, vector<16x128xf32>
    %cst_15 = arith.constant dense<0.000000e+00> : vector<24x128xf32>
    %29 = tpu.matmul %27, %28, %cst_15 {dimension_numbers = #tpu.dot_dimension_numbers<[1], [0], [0], [1], [0, 0, 1, 1], [], []>} : vector<24x16xf32>, vector<16x128xf32>, vector<24x128xf32> -> vector<24x128xf32>
    %30 = arith.addf %23, %29 : vector<24x128xf32>
    %c0_16 = arith.constant 0 : index
    %c0_17 = arith.constant 0 : index
    %c0_18 = arith.constant 0 : index
    %31 = vector.load %arg4[%c0_16, %c0_17, %c0_18] : memref<1x24x128xf32, #tpu.memory_space<vmem>>, vector<1x24x128xf32>
    %32 = vector.shape_cast %31 : vector<1x24x128xf32> to vector<24x128xf32>
    %33 = vector.shape_cast %30 : vector<24x128xf32> to vector<1x24x128xf32>
    tpu.vector_store %arg4[%c0_16, %c0_17, %c0_18], %33 {strides = array<i32>} : memref<1x24x128xf32, #tpu.memory_space<vmem>>, vector<1x24x128xf32>,
    return
  }
  func.func @transform_0(%arg0: i32, %arg1: i32) -> (i32, i32, i32) {
    %c0_i32 = arith.constant 0 : i32
    %c0_i32_0 = arith.constant 0 : i32
    %c0_i32_1 = arith.constant 0 : i32
    return %arg0, %c0_i32, %c0_i32_0 : i32, i32, i32
  }
  func.func @transform_1(%arg0: i32, %arg1: i32) -> (i32, i32) {
    %c0_i32 = arith.constant 0 : i32
    %c0_i32_0 = arith.constant 0 : i32
    %c0_i32_1 = arith.constant 0 : i32
    return %c0_i32, %c0_i32_0 : i32, i32
  }
  func.func @transform_2(%arg0: i32, %arg1: i32) -> (i32, i32, i32) {
    %c0_i32 = arith.constant 0 : i32
    %c0_i32_0 = arith.constant 0 : i32
    return %arg0, %arg1, %c0_i32 : i32, i32, i32
  }
}

</mosaic_0001>

<llo_original>
// kernel: tpu_custom_call.1
$region0: #{tpu_custom_call.1}
  #allocation0 [shape = 'u32[]', space=smem, size = 0x4, offset = 0x4, fixed_abs, tag = 'smem constant byte address 0x4 - core index']
  #allocation1 [shape = 'u32[144,128]{1,0:T(1,128)}', space=vmem, size = 0x12000, scoped, tag = 'internal scratch']
  %s0 = inlined_call_operand.vmem [shape: f32[2,27,16], index: 0, kind: input, shape index: {}]
  %s1 = inlined_call_operand.vmem [shape: f32[64,128], index: 1, kind: input, shape index: {}]
  %s2 = inlined_call_operand.hbm [shape: f32[2,24,128], index: 2, kind: output, shape index: {}]
  %s3 = sld [smem:[#allocation0]]
  $region41: #{tpu_custom_call.1} parent=0
    _
  %s5 = ssub.s32 1, %s3
  %s6 = scalar_select 0, %s5, %s3
  $region1: #{tpu_custom_call.1} parent=0
    #allocation2 [shape = 'u8[24576]{0}', space=vmem, size = 0x6000, scoped, tag = 'output window, operand 0']
    #allocation3 [shape = 's32[2]{0}', space=sflag, size = 0x8, scoped, tag = 'scoped memory for tpu_custom_call.1']
    %7 = vsyncpa [#allocation3], 0
    %s8 = scalar_lea.sflag [#allocation3], 1
    %9 = vsyncpa %s8, 0
    loop: start=0, step=1, limit=4
    $region2: #{tpu_custom_call.1} parent=1 // loop_pre_header
      _
    $region3: #{tpu_custom_call.1} parent=1 // loop_header
      %s11 = sphi 0, %s15
      %p12 = scmp.ge.s32.totalorder %s11, 4
      %s18 = sphi 0, %s30
      %s19 = sphi 0, %s26
      %s20 = sphi 0, %s18
      %s21 = sphi 0, %s19
      %s22 = sphi 0, %s20
      %s23 = sphi 0, %s21
      %s33 = sphi 0, %s35
      %s36 = sphi 0, %s33
      %s37 = sphi 0, %s36
      %s53 = sphi 0, %s37
      %s57 = sphi 0, %s57
      %s59 = sphi 0, %s57
      %s60 = sphi 0, %s59
      %s74 = sphi 0, %s60
      %s82 = sphi 0, %s84
      %s85 = sphi 0, %s82
      %s86 = sphi 0, %s85
      %s102 = sphi 0, %s86
    $region4: #{tpu_custom_call.1} parent=1 // loop_header_branch
      %14 = sbr.rel (%p12) target = $region8
    $region5: #{tpu_custom_call.1} parent=1 // loop_body
      %s16 = ssub.s32 %s11, 1
      %s17 = ssub.s32 %s11, 2
      %s24 = sadd.s32 1, %s19
      %p25 = scmp.ge.s32.totalorder %s24, 1
      %s26 = scalar_select %p25, 0, %s24
      %s27 = sadd.s32 1, %s18
      %s28 = scalar_select %p25, %s27, %s18
      %p29 = scmp.ge.s32.totalorder %s28, 2
      %s30 = scalar_select %p29, 0, %s28
      %s31 = ssub.s32 %s18, %s30
      %p32 = scmp.eq.s32.totalorder %s31, 0
      %s34 = sadd.s32 %s33, 1
      %s35 = scalar_select %p32, %s33, %s34
      %p38 = pneg %p32
      %p39 = scmp.eq.s32.totalorder %s11, 1
      %p40 = por %p38, %p39
      %p41 = scmp.ne.s32.totalorder %s33, %s36
      %p42 = scmp.eq.s32.totalorder %s11, 0
      %p43 = por %p41, %p42
      %p44 = scmp.ne.s32.totalorder %s33, %s36
      %p45 = scmp.eq.s32.totalorder %s16, 1
      %p46 = por %p44, %p45
      %p47 = scmp.ne.s32.totalorder %s36, %s37
      %p48 = scmp.eq.s32.totalorder %s16, 0
      %p49 = por %p47, %p48
      %p50 = scmp.ne.s32.totalorder %s36, %s37
      %p51 = scmp.eq.s32.totalorder %s17, 1
      %p52 = por %p50, %p51
      %p54 = scmp.ne.s32.totalorder %s37, %s53
      %p55 = scmp.eq.s32.totalorder %s17, 0
      %p56 = por %p54, %p55
      %s58 = sadd.s32 %s57, 1
      %p61 = scmp.eq.s32.totalorder %s11, 1
      %p62 = scmp.ne.s32.totalorder %s57, %s59
      %p63 = scmp.eq.s32.totalorder %s11, 0
      %p64 = por %p62, %p63
      %p65 = scmp.ne.s32.totalorder %s57, %s59
      %p66 = scmp.eq.s32.totalorder %s16, 1
      %p67 = por %p65, %p66
      %p68 = scmp.ne.s32.totalorder %s59, %s60
      %p69 = scmp.eq.s32.totalorder %s16, 0
      %p70 = por %p68, %p69
      %p71 = scmp.ne.s32.totalorder %s59, %s60
      %p72 = scmp.eq.s32.totalorder %s17, 1
      %p73 = por %p71, %p72
      %p75 = scmp.ne.s32.totalorder %s60, %s74
      %p76 = scmp.eq.s32.totalorder %s17, 0
      %p77 = por %p75, %p76
      %s78 = ssub.s32 %s18, %s30
      %s79 = ssub.s32 %s19, %s26
      %s80 = sor.u32 %s78, %s79
      %p81 = scmp.eq.s32.totalorder %s80, 0
      %s83 = sadd.s32 %s82, 1
      %s84 = scalar_select %p81, %s82, %s83
      %p87 = pneg %p81
      %p88 = scmp.eq.s32.totalorder %s11, 1
      %p89 = por %p87, %p88
      %p90 = scmp.ne.s32.totalorder %s82, %s85
      %p91 = scmp.eq.s32.totalorder %s11, 0
      %p92 = por %p90, %p91
      %p93 = scmp.ne.s32.totalorder %s82, %s85
      %p94 = scmp.eq.s32.totalorder %s16, 1
      %p95 = por %p93, %p94
      %p96 = scmp.ne.s32.totalorder %s85, %s86
      %p97 = scmp.eq.s32.totalorder %s16, 0
      %p98 = por %p96, %p97
      %p99 = scmp.ne.s32.totalorder %s85, %s86
      %p100 = scmp.eq.s32.totalorder %s17, 1
      %p101 = por %p99, %p100
      %p103 = scmp.ne.s32.totalorder %s86, %s102
      %p104 = scmp.eq.s32.totalorder %s17, 0
      %p105 = por %p103, %p104
      %p106 = scmp.le.s32.totalorder 1, %s11
      %p107 = scmp.lt.s32.totalorder %s11, 3
      %p108 = pnand %p106, %p107
      %p109 = pneg %p108
      // Predicated region
      $region9: #{tpu_custom_call.1} parent=5 // pred_check
        _
      $region10: #{tpu_custom_call.1} parent=5 // pred_check_branch
        %111 = sbr.rel (%p108) target = $region12
      $region11: #{tpu_custom_call.1} parent=5 // pred_region
        %s112 = ssub.s32 %s11, 1
        // Predicated region
        $region13: #{tpu_custom_call.1} parent=11 // pred_check
          %p113 = pneg %p70
        $region14: #{tpu_custom_call.1} parent=11 // pred_check_branch
          %115 = sbr.rel (%p113) target = $region16
        $region15: #{tpu_custom_call.1} parent=11 // pred_region
          _
        $region16: #{tpu_custom_call.1} parent=11 // pred_fallthru
          _
      $region12: #{tpu_custom_call.1} parent=5 // pred_fallthru
        _
      %p116 = scmp.lt.s32.totalorder %s11, 2
      // Predicated region
      $region17: #{tpu_custom_call.1} parent=5 // pred_check
        %p117 = pneg %p116
      $region18: #{tpu_custom_call.1} parent=5 // pred_check_branch
        %119 = sbr.rel (%p117) target = $region20
      $region19: #{tpu_custom_call.1} parent=5 // pred_region
        // Predicated region
        $region21: #{tpu_custom_call.1} parent=19 // pred_check
          %p120 = pneg %p43
        $region22: #{tpu_custom_call.1} parent=19 // pred_check_branch
          %122 = sbr.rel (%p120) target = $region24
        $region23: #{tpu_custom_call.1} parent=19 // pred_region
          %p123 = scmp.lt.s32.totalorder %s18, 1
          %s124 = scalar_select %p123, %s18, 1
          %s125 = smul.addr %s124, 4
          %s126 = smul.addr %s125, 8
          %s127 = scalar_lea.vmem %s0, %s126
        $region24: #{tpu_custom_call.1} parent=19 // pred_fallthru
          _
      $region20: #{tpu_custom_call.1} parent=5 // pred_fallthru
        _
      %p128 = scmp.le.s32.totalorder 1, %s11
      %p129 = scmp.lt.s32.totalorder %s11, 3
      %p130 = pnand %p128, %p129
      %p131 = pneg %p130
      // Predicated region
      $region25: #{tpu_custom_call.1} parent=5 // pred_check
        _
      $region26: #{tpu_custom_call.1} parent=5 // pred_check_branch
        %133 = sbr.rel (%p130) target = $region28
      $region27: #{tpu_custom_call.1} parent=5 // pred_region
        %s134 = ssub.s32 %s11, 1
        %p135 = scmp.lt.s32.totalorder %s20, 1
        %s136 = scalar_select %p135, %s20, 1
        %s137 = smul.addr %s136, 4
        %s138 = smul.addr %s137, 8
        %s139 = scalar_lea.vmem %s0, %s138
        %p140 = pneg %p49
        %p141 = pneg %p46
        %p142 = pneg %p70
        %p143 = pneg %p67
        %p144 = pneg %p98
        %p145 = pneg %p95
        %s146 = sand.u32 %s85, 1
        %s147 = scalar_lea.sflag [#allocation3], %s146
        %s148 = sand.u32 %s85, 1
        %s149 = smul.addr %s148, 24
        %s150 = scalar_lea.vmem [#allocation2], %s149
        %p151 = scmp.lt.s32.totalorder %s20, 1
        %s152 = scalar_select %p151, %s20, 1
        %s153 = smul.addr %s152, 4
        %s154 = smul.addr %s153, 8
        %s155 = scalar_lea.vmem %s0, %s154
        %s156 = smul.u32 3, %s21
        %s157 = smul.u32 %s21, 24
        %s158 = scalar_lea.vmem %s155, %s157
        %v159 = vld [vmem:[%s158] sm:$0xff]
        %v160 = vld [vmem:[%s158 + $0x8] sm:$0xff]
        %v161 = vld [vmem:[%s158 + $0x10] sm:$0xff]
        %v162 = vld [vmem:[%s1] sm:$0xff]
        %v163 = vld [vmem:[%s1 + $0x8] sm:$0xff]
        %s164 = sadd.s32 %s157, 1
        %s165 = scalar_lea.vmem %s155, %s164
        %v166 = vld [vmem:[%s165] sm:$0xff]
        %v167 = vld [vmem:[%s165 + $0x8] sm:$0xff]
        %v168 = vld [vmem:[%s165 + $0x10] sm:$0xff]
        %v169 = vld [vmem:[%s1 + $0x10] sm:$0xff]
        %v170 = vld [vmem:[%s1 + $0x18] sm:$0xff]
        %vm171 = vcmask 130048
        %v173 = vsel %vm171, %v166, 0
        %v176 = vsel %vm171, %v167, 0
        %v179 = vsel %vm171, %v168, 0
        %181 = vmatprep.subr.mxu0 0.0
        %182 = vmatpush1.msra.mxu0 %v169
        %183 = vmatprep.subr.mxu0 0.0
        %184 = vmatpush1.msra.mxu0 %v170
        %185 = vmatprep.subr.mxu0 0.0
        %186 = vmatpush1.msra.mxu0 0.0
        %187 = vmatprep.subr.mxu0 0.0
        %188 = vmatpush1.msra.mxu0 0.0
        %189 = vmatprep.subr.mxu0 0.0
        %190 = vmatpush1.msra.mxu0 0.0
        %191 = vmatprep.subr.mxu0 0.0
        %192 = vmatpush1.msra.mxu0 0.0
        %193 = vmatprep.subr.mxu0 0.0
        %194 = vmatpush1.msra.mxu0 0.0
        %195 = vmatprep.subr.mxu0 0.0
        %196 = vmatpush1.msra.mxu0 0.0
        %197 = vmatprep.subr.mxu0 0.0
        %198 = vmatpush1.msra.mxu0 0.0
        %199 = vmatprep.subr.mxu0 0.0
        %200 = vmatpush1.msra.mxu0 0.0
        %201 = vmatprep.subr.mxu0 0.0
        %202 = vmatpush1.msra.mxu0 0.0
        %203 = vmatprep.subr.mxu0 0.0
        %204 = vmatpush1.msra.mxu0 0.0
        %205 = vmatprep.subr.mxu0 0.0
        %206 = vmatpush1.msra.mxu0 0.0
        %207 = vmatprep.subr.mxu0 0.0
        %208 = vmatpush1.msra.mxu0 0.0
        %209 = vmatprep.subr.mxu0 0.0
        %210 = vmatpush1.msra.mxu0 0.0
        %211 = vmatprep.subr.mxu0 0.0
        %212 = vmatpush1.msra.mxu0 0.0
        %213 = vmatprep.subr.mxu0 0.0
        %214 = vmatpush1.msra.mxu0 0.0
        %215 = vmatprep.subr.mxu0 0.0
        %216 = vmatpush1.msra.mxu0 0.0
        %217 = vmatprep.subr.mxu0 0.0
        %218 = vmatpush1.msra.mxu0 0.0
        %219 = vmatprep.subr.mxu0 0.0
        %220 = vmatpush1.msra.mxu0 0.0
        %221 = vmatprep.subr.mxu0 0.0
        %222 = vmatpush1.msra.mxu0 0.0
        %223 = vmatprep.subr.mxu0 0.0
        %224 = vmatpush1.msra.mxu0 0.0
        %225 = vmatprep.subr.mxu0 0.0
        %226 = vmatpush1.msra.mxu0 0.0
        %227 = vmatprep.subr.mxu0 0.0
        %228 = vmatpush1.msra.mxu0 0.0
        %229 = vmatprep.subr.mxu0 0.0
        %230 = vmatpush1.msra.mxu0 0.0
        %231 = vmatprep.subr.mxu0 0.0
        %232 = vmatpush1.msra.mxu0 0.0
        %233 = vmatprep.subr.mxu0 0.0
        %234 = vmatpush1.msra.mxu0 0.0
        %235 = vmatprep.subr.mxu0 0.0
        %236 = vmatpush1.msra.mxu0 0.0
        %237 = vmatprep.subr.mxu0 0.0
        %238 = vmatpush1.msra.mxu0 0.0
        %239 = vmatprep.subr.mxu0 0.0
        %240 = vmatpush1.msra.mxu0 0.0
        %241 = vmatprep.subr.mxu0 0.0
        %242 = vmatpush1.msra.mxu0 0.0
        %243 = vmatprep.subr.mxu0 0.0
        %244 = vmatpush1.msra.mxu0 0.0
        %245 = vmatprep.mubr.f32.mxu0 0.0
        %246 = vmatmul.mubr.f32.gmra.mrb[0].mxu0 %v173
        %v247 = vpop.f32.mrb[0].mxu0
        %v248 = vadd.f32 0.0, %v247
        %v249 = vpop.f32.mrb[0].mxu0
        %250 = vmatprep.mubr.f32.mxu0 0.0
        %251 = vmatmul.mubr.f32.gmra.mrb[0].mxu0 %v176
        %v252 = vpop.f32.mrb[0].mxu0
        %v253 = vadd.f32 0.0, %v252
        %v254 = vpop.f32.mrb[0].mxu0
        %255 = vmatprep.mubr.f32.mxu0 0.0
        %256 = vmatmul.mubr.f32.gmra.mrb[0].mxu0 %v179
        %v257 = vpop.f32.mrb[0].mxu0
        %v258 = vadd.f32 0.0, %v257
        %v259 = vpop.f32.mrb[0].mxu0
        %260 = vdwg.mxu0
        %v262 = vsel %vm171, %v159, 0
        %v265 = vsel %vm171, %v160, 0
        %v268 = vsel %vm171, %v161, 0
        %270 = vmatprep.subr.mxu0 0.0
        %271 = vmatpush1.msra.mxu0 %v162
        %272 = vmatprep.subr.mxu0 0.0
        %273 = vmatpush1.msra.mxu0 %v163
        %274 = vmatprep.subr.mxu0 0.0
        %275 = vmatpush1.msra.mxu0 0.0
        %276 = vmatprep.subr.mxu0 0.0
        %277 = vmatpush1.msra.mxu0 0.0
        %278 = vmatprep.subr.mxu0 0.0
        %279 = vmatpush1.msra.mxu0 0.0
        %280 = vmatprep.subr.mxu0 0.0
        %281 = vmatpush1.msra.mxu0 0.0
        %282 = vmatprep.subr.mxu0 0.0
        %283 = vmatpush1.msra.mxu0 0.0
        %284 = vmatprep.subr.mxu0 0.0
        %285 = vmatpush1.msra.mxu0 0.0
        %286 = vmatprep.subr.mxu0 0.0
        %287 = vmatpush1.msra.mxu0 0.0
        %288 = vmatprep.subr.mxu0 0.0
        %289 = vmatpush1.msra.mxu0 0.0
        %290 = vmatprep.subr.mxu0 0.0
        %291 = vmatpush1.msra.mxu0 0.0
        %292 = vmatprep.subr.mxu0 0.0
        %293 = vmatpush1.msra.mxu0 0.0
        %294 = vmatprep.subr.mxu0 0.0
        %295 = vmatpush1.msra.mxu0 0.0
        %296 = vmatprep.subr.mxu0 0.0
        %297 = vmatpush1.msra.mxu0 0.0
        %298 = vmatprep.subr.mxu0 0.0
        %299 = vmatpush1.msra.mxu0 0.0
        %300 = vmatprep.subr.mxu0 0.0
        %301 = vmatpush1.msra.mxu0 0.0
        %302 = vmatprep.subr.mxu0 0.0
        %303 = vmatpush1.msra.mxu0 0.0
        %304 = vmatprep.subr.mxu0 0.0
        %305 = vmatpush1.msra.mxu0 0.0
        %306 = vmatprep.subr.mxu0 0.0
        %307 = vmatpush1.msra.mxu0 0.0
        %308 = vmatprep.subr.mxu0 0.0
        %309 = vmatpush1.msra.mxu0 0.0
        %310 = vmatprep.subr.mxu0 0.0
        %311 = vmatpush1.msra.mxu0 0.0
        %312 = vmatprep.subr.mxu0 0.0
        %313 = vmatpush1.msra.mxu0 0.0
        %314 = vmatprep.subr.mxu0 0.0
        %315 = vmatpush1.msra.mxu0 0.0
        %316 = vmatprep.subr.mxu0 0.0
        %317 = vmatpush1.msra.mxu0 0.0
        %318 = vmatprep.subr.mxu0 0.0
        %319 = vmatpush1.msra.mxu0 0.0
        %320 = vmatprep.subr.mxu0 0.0
        %321 = vmatpush1.msra.mxu0 0.0
        %322 = vmatprep.subr.mxu0 0.0
        %323 = vmatpush1.msra.mxu0 0.0
        %324 = vmatprep.subr.mxu0 0.0
        %325 = vmatpush1.msra.mxu0 0.0
        %326 = vmatprep.subr.mxu0 0.0
        %327 = vmatpush1.msra.mxu0 0.0
        %328 = vmatprep.subr.mxu0 0.0
        %329 = vmatpush1.msra.mxu0 0.0
        %330 = vmatprep.subr.mxu0 0.0
        %331 = vmatpush1.msra.mxu0 0.0
        %332 = vmatprep.subr.mxu0 0.0
        %333 = vmatpush1.msra.mxu0 0.0
        %334 = vmatprep.mubr.f32.mxu0 0.0
        %335 = vmatmul.mubr.f32.gmra.mrb[0].mxu0 %v262
        %v336 = vpop.f32.mrb[0].mxu0
        %v337 = vadd.f32 %v248, %v336
        %v338 = vpop.f32.mrb[0].mxu0
        %339 = vmatprep.mubr.f32.mxu0 0.0
        %340 = vmatmul.mubr.f32.gmra.mrb[0].mxu0 %v265
        %v341 = vpop.f32.mrb[0].mxu0
        %v342 = vadd.f32 %v253, %v341
        %v343 = vpop.f32.mrb[0].mxu0
        %344 = vmatprep.mubr.f32.mxu0 0.0
        %345 = vmatmul.mubr.f32.gmra.mrb[0].mxu0 %v268
        %v346 = vpop.f32.mrb[0].mxu0
        %v347 = vadd.f32 %v258, %v346
        %v348 = vpop.f32.mrb[0].mxu0
        %349 = vdwg.mxu0
        %s350 = sadd.s32 %s157, 2
        %s351 = scalar_lea.vmem %s155, %s350
        %v352 = vld [vmem:[%s351] sm:$0xff]
        %v353 = vld [vmem:[%s351 + $0x8] sm:$0xff]
        %v354 = vld [vmem:[%s351 + $0x10] sm:$0xff]
        %v355 = vld [vmem:[%s1 + $0x20] sm:$0xff]
        %v356 = vld [vmem:[%s1 + $0x28] sm:$0xff]
        %v358 = vsel %vm171, %v352, 0
        %v361 = vsel %vm171, %v353, 0
        %v364 = vsel %vm171, %v354, 0
        %366 = vmatprep.subr.mxu0 0.0
        %367 = vmatpush1.msra.mxu0 %v355
        %368 = vmatprep.subr.mxu0 0.0
        %369 = vmatpush1.msra.mxu0 %v356
        %370 = vmatprep.subr.mxu0 0.0
        %371 = vmatpush1.msra.mxu0 0.0
        %372 = vmatprep.subr.mxu0 0.0
        %373 = vmatpush1.msra.mxu0 0.0
        %374 = vmatprep.subr.mxu0 0.0
        %375 = vmatpush1.msra.mxu0 0.0
        %376 = vmatprep.subr.mxu0 0.0
        %377 = vmatpush1.msra.mxu0 0.0
        %378 = vmatprep.subr.mxu0 0.0
        %379 = vmatpush1.msra.mxu0 0.0
        %380 = vmatprep.subr.mxu0 0.0
        %381 = vmatpush1.msra.mxu0 0.0
        %382 = vmatprep.subr.mxu0 0.0
        %383 = vmatpush1.msra.mxu0 0.0
        %384 = vmatprep.subr.mxu0 0.0
        %385 = vmatpush1.msra.mxu0 0.0
        %386 = vmatprep.subr.mxu0 0.0
        %387 = vmatpush1.msra.mxu0 0.0
        %388 = vmatprep.subr.mxu0 0.0
        %389 = vmatpush1.msra.mxu0 0.0
        %390 = vmatprep.subr.mxu0 0.0
        %391 = vmatpush1.msra.mxu0 0.0
        %392 = vmatprep.subr.mxu0 0.0
        %393 = vmatpush1.msra.mxu0 0.0
        %394 = vmatprep.subr.mxu0 0.0
        %395 = vmatpush1.msra.mxu0 0.0
        %396 = vmatprep.subr.mxu0 0.0
        %397 = vmatpush1.msra.mxu0 0.0
        %398 = vmatprep.subr.mxu0 0.0
        %399 = vmatpush1.msra.mxu0 0.0
        %400 = vmatprep.subr.mxu0 0.0
        %401 = vmatpush1.msra.mxu0 0.0
        %402 = vmatprep.subr.mxu0 0.0
        %403 = vmatpush1.msra.mxu0 0.0
        %404 = vmatprep.subr.mxu0 0.0
        %405 = vmatpush1.msra.mxu0 0.0
        %406 = vmatprep.subr.mxu0 0.0
        %407 = vmatpush1.msra.mxu0 0.0
        %408 = vmatprep.subr.mxu0 0.0
        %409 = vmatpush1.msra.mxu0 0.0
        %410 = vmatprep.subr.mxu0 0.0
        %411 = vmatpush1.msra.mxu0 0.0
        %412 = vmatprep.subr.mxu0 0.0
        %413 = vmatpush1.msra.mxu0 0.0
        %414 = vmatprep.subr.mxu0 0.0
        %415 = vmatpush1.msra.mxu0 0.0
        %416 = vmatprep.subr.mxu0 0.0
        %417 = vmatpush1.msra.mxu0 0.0
        %418 = vmatprep.subr.mxu0 0.0
        %419 = vmatpush1.msra.mxu0 0.0
        %420 = vmatprep.subr.mxu0 0.0
        %421 = vmatpush1.msra.mxu0 0.0
        %422 = vmatprep.subr.mxu0 0.0
        %423 = vmatpush1.msra.mxu0 0.0
        %424 = vmatprep.subr.mxu0 0.0
        %425 = vmatpush1.msra.mxu0 0.0
        %426 = vmatprep.subr.mxu0 0.0
        %427 = vmatpush1.msra.mxu0 0.0
        %428 = vmatprep.subr.mxu0 0.0
        %429 = vmatpush1.msra.mxu0 0.0
        %430 = vmatprep.mubr.f32.mxu0 0.0
        %431 = vmatmul.mubr.f32.gmra.mrb[0].mxu0 %v358
        %v432 = vpop.f32.mrb[0].mxu0
        %v433 = vadd.f32 0.0, %v432
        %v434 = vpop.f32.mrb[0].mxu0
        %435 = vmatprep.mubr.f32.mxu0 0.0
        %436 = vmatmul.mubr.f32.gmra.mrb[0].mxu0 %v361
        %v437 = vpop.f32.mrb[0].mxu0
        %v438 = vadd.f32 0.0, %v437
        %v439 = vpop.f32.mrb[0].mxu0
        %440 = vmatprep.mubr.f32.mxu0 0.0
        %441 = vmatmul.mubr.f32.gmra.mrb[0].mxu0 %v364
        %v442 = vpop.f32.mrb[0].mxu0
        %v443 = vadd.f32 0.0, %v442
        %v444 = vpop.f32.mrb[0].mxu0
        %445 = vdwg.mxu0
        %v446 = vadd.f32 %v337, %v433
        %v447 = vadd.f32 %v342, %v438
        %v448 = vadd.f32 %v347, %v443
        %s449 = sadd.s32 %s157, 3
        %s450 = scalar_lea.vmem %s155, %s449
        %v451 = vld [vmem:[%s450] sm:$0xff]
        %v452 = vld [vmem:[%s450 + $0x8] sm:$0xff]
        %v453 = vld [vmem:[%s450 + $0x10] sm:$0xff]
        %v454 = vld [vmem:[%s1 + $0x30] sm:$0xff]
        %v455 = vld [vmem:[%s1 + $0x38] sm:$0xff]
        %v457 = vsel %vm171, %v451, 0
        %v460 = vsel %vm171, %v452, 0
        %v463 = vsel %vm171, %v453, 0
        %465 = vmatprep.subr.mxu0 0.0
        %466 = vmatpush1.msra.mxu0 %v454
        %467 = vmatprep.subr.mxu0 0.0
        %468 = vmatpush1.msra.mxu0 %v455
        %469 = vmatprep.subr.mxu0 0.0
        %470 = vmatpush1.msra.mxu0 0.0
        %471 = vmatprep.subr.mxu0 0.0
        %472 = vmatpush1.msra.mxu0 0.0
        %473 = vmatprep.subr.mxu0 0.0
        %474 = vmatpush1.msra.mxu0 0.0
        %475 = vmatprep.subr.mxu0 0.0
        %476 = vmatpush1.msra.mxu0 0.0
        %477 = vmatprep.subr.mxu0 0.0
        %478 = vmatpush1.msra.mxu0 0.0
        %479 = vmatprep.subr.mxu0 0.0
        %480 = vmatpush1.msra.mxu0 0.0
        %481 = vmatprep.subr.mxu0 0.0
        %482 = vmatpush1.msra.mxu0 0.0
        %483 = vmatprep.subr.mxu0 0.0
        %484 = vmatpush1.msra.mxu0 0.0
        %485 = vmatprep.subr.mxu0 0.0
        %486 = vmatpush1.msra.mxu0 0.0
        %487 = vmatprep.subr.mxu0 0.0
        %488 = vmatpush1.msra.mxu0 0.0
        %489 = vmatprep.subr.mxu0 0.0
        %490 = vmatpush1.msra.mxu0 0.0
        %491 = vmatprep.subr.mxu0 0.0
        %492 = vmatpush1.msra.mxu0 0.0
        %493 = vmatprep.subr.mxu0 0.0
        %494 = vmatpush1.msra.mxu0 0.0
        %495 = vmatprep.subr.mxu0 0.0
        %496 = vmatpush1.msra.mxu0 0.0
        %497 = vmatprep.subr.mxu0 0.0
        %498 = vmatpush1.msra.mxu0 0.0
        %499 = vmatprep.subr.mxu0 0.0
        %500 = vmatpush1.msra.mxu0 0.0
        %501 = vmatprep.subr.mxu0 0.0
        %502 = vmatpush1.msra.mxu0 0.0
        %503 = vmatprep.subr.mxu0 0.0
        %504 = vmatpush1.msra.mxu0 0.0
        %505 = vmatprep.subr.mxu0 0.0
        %506 = vmatpush1.msra.mxu0 0.0
        %507 = vmatprep.subr.mxu0 0.0
        %508 = vmatpush1.msra.mxu0 0.0
        %509 = vmatprep.subr.mxu0 0.0
        %510 = vmatpush1.msra.mxu0 0.0
        %511 = vmatprep.subr.mxu0 0.0
        %512 = vmatpush1.msra.mxu0 0.0
        %513 = vmatprep.subr.mxu0 0.0
        %514 = vmatpush1.msra.mxu0 0.0
        %515 = vmatprep.subr.mxu0 0.0
        %516 = vmatpush1.msra.mxu0 0.0
        %517 = vmatprep.subr.mxu0 0.0
        %518 = vmatpush1.msra.mxu0 0.0
        %519 = vmatprep.subr.mxu0 0.0
        %520 = vmatpush1.msra.mxu0 0.0
        %521 = vmatprep.subr.mxu0 0.0
        %522 = vmatpush1.msra.mxu0 0.0
        %523 = vmatprep.subr.mxu0 0.0
        %524 = vmatpush1.msra.mxu0 0.0
        %525 = vmatprep.subr.mxu0 0.0
        %526 = vmatpush1.msra.mxu0 0.0
        %527 = vmatprep.subr.mxu0 0.0
        %528 = vmatpush1.msra.mxu0 0.0
        %529 = vmatprep.mubr.f32.mxu0 0.0
        %530 = vmatmul.mubr.f32.gmra.mrb[0].mxu0 %v457
        %v531 = vpop.f32.mrb[0].mxu0
        %v532 = vadd.f32 0.0, %v531
        %v533 = vpop.f32.mrb[0].mxu0
        %534 = vmatprep.mubr.f32.mxu0 0.0
        %535 = vmatmul.mubr.f32.gmra.mrb[0].mxu0 %v460
        %v536 = vpop.f32.mrb[0].mxu0
        %v537 = vadd.f32 0.0, %v536
        %v538 = vpop.f32.mrb[0].mxu0
        %539 = vmatprep.mubr.f32.mxu0 0.0
        %540 = vmatmul.mubr.f32.gmra.mrb[0].mxu0 %v463
        %v541 = vpop.f32.mrb[0].mxu0
        %v542 = vadd.f32 0.0, %v541
        %v543 = vpop.f32.mrb[0].mxu0
        %544 = vdwg.mxu0
        %v545 = vadd.f32 %v446, %v532
        %v546 = vadd.f32 %v447, %v537
        %v547 = vadd.f32 %v448, %v542
        %548 = vst [vmem:[%s150] sm:$0xff] %v545
        %549 = vst [vmem:[%s150 + $0x8] sm:$0xff] %v546
        %550 = vst [vmem:[%s150 + $0x10] sm:$0xff] %v547
        %s551 = sand.u32 %s85, 1
        %s552 = scalar_lea.sflag [#allocation3], %s551
        %s553 = sand.u32 %s85, 1
        %s554 = smul.addr %s553, 24
        %s555 = scalar_lea.vmem [#allocation2], %s554
        // Predicated region
        $region29: #{tpu_custom_call.1} parent=27 // pred_check
          %p556 = pneg %p95
        $region30: #{tpu_custom_call.1} parent=27 // pred_check_branch
          %558 = sbr.rel (%p556) target = $region32
        $region31: #{tpu_custom_call.1} parent=27 // pred_region
          %s559 = smul.u32 3, %s21
          %s561 = ssub.s32 384, 384
          %562 = vsyncadd %s552, %s561
          %s563 = smul.addr %s20, 3
          %s564 = sadd.s32 %s559, %s563
          %s565 = smul.addr %s564, 128
          %s566 = scalar_lea.hbm %s2, %s565
          %s567 = sshll.u32 %s555, 4
          %s568 = int_to_ptr.vmem [resolvable:$true] %s567
          %573 = dma.vmem_to_hbm [thread:$0]  %s568, 384, %s566, %s552, 128, 128, 8
        $region32: #{tpu_custom_call.1} parent=27 // pred_fallthru
          _
      $region28: #{tpu_custom_call.1} parent=5 // pred_fallthru
        _
      %p574 = scmp.le.s32.totalorder 2, %s11
      // Predicated region
      $region33: #{tpu_custom_call.1} parent=5 // pred_check
        %p575 = pneg %p574
      $region34: #{tpu_custom_call.1} parent=5 // pred_check_branch
        %577 = sbr.rel (%p575) target = $region36
      $region35: #{tpu_custom_call.1} parent=5 // pred_region
        %s578 = ssub.s32 %s11, 2
        // Predicated region
        $region37: #{tpu_custom_call.1} parent=35 // pred_check
          %p579 = pneg %p101
        $region38: #{tpu_custom_call.1} parent=35 // pred_check_branch
          %581 = sbr.rel (%p579) target = $region40
        $region39: #{tpu_custom_call.1} parent=35 // pred_region
          %s582 = sand.u32 %s86, 1
          %s583 = scalar_lea.sflag [#allocation3], %s582
          %s584 = sand.u32 %s86, 1
          %s585 = smul.addr %s584, 24
          %s586 = scalar_lea.vmem [#allocation2], %s585
          %587 = dma.done %s583, 384
        $region40: #{tpu_custom_call.1} parent=35 // pred_fallthru
          _
      $region36: #{tpu_custom_call.1} parent=5 // pred_fallthru
        _
    $region6: #{tpu_custom_call.1} parent=1 // loop_footer
      %s15 = sadd.s32 1, %s11
    $region7: #{tpu_custom_call.1} parent=1 // loop_footer_branch
      %10 = sbr.rel target = $region3
    $region8: #{tpu_custom_call.1} parent=1 // loop_exit
      _
    %588 = vsyncpa [#allocation3], 1
    %s589 = scalar_lea.sflag [#allocation3], 1
    %590 = vsyncpa %s589, 1

</llo_original>
